<compile_context>
chip_gen: v7x
topology: tpu7x:2x2x1
jax: 0.10.0
libtpu: 0.0.40
codegen_flags: <defaults>
</compile_context>

<pallas_src>
import math

import jax
import jax.numpy as jnp
from jax.experimental import pallas as pl
from jax.experimental.pallas import tpu as pltpu


def _linear_kernel(x_ref, w_ref, b_ref, o_ref):
    # x_ref: (tm, K) row tile; w_ref: (K, tn) resident (pre-transposed);
    # b_ref: (1, tn) resident; o_ref: (tm, tn).
    acc = jnp.dot(x_ref[...], w_ref[...], preferred_element_type=jnp.float32)
    o_ref[...] = (acc + b_ref[...].astype(jnp.float32)).astype(o_ref.dtype)


# VMEM sizing. Working budget covers every accounted buffer (lane/sublane-padded);
# the compiler limit leaves headroom above it and stays inside v7x's 64 MiB per-TC
# VMEM (v5e/v6e have 128 MiB physical, 16/32 MiB scoped default -> raise explicitly).
_VMEM_WORKING_BUDGET = 36 * 1024 * 1024
_VMEM_LIMIT_BYTES = 48 * 1024 * 1024
# Keep a single resident weight tile under this so streamed row tiles keep most of VMEM.
_WEIGHT_TILE_TARGET = 12 * 1024 * 1024
# Aim for at least this much real HBM traffic per grid step (~0.35us/step overhead).
_STEP_TRAFFIC_TARGET = 2 * 1024 * 1024


def _round_up(v, a):
    return (v + a - 1) // a * a


def _round_down(v, a):
    return (v // a) * a


def _sublane_align(itemsize):
    # 8 rows for f32, 16 for bf16, 32 for int8 (sublane packing).
    return max(8, 32 // max(int(itemsize), 1))


def _choose_block_n(k, n, itemsize):
    """Column tile for the weight/output: full N if the weight fits, else 128-multiples."""
    sub = _sublane_align(itemsize)
    w_full = _round_up(k, sub) * _round_up(n, 128) * itemsize
    if w_full <= _WEIGHT_TILE_TARGET or n <= 128:
        return n
    tn = _round_down(_WEIGHT_TILE_TARGET // (_round_up(k, sub) * itemsize), 128)
    tn = max(128, tn)
    return n if tn >= n else int(tn)


def _choose_block_m(m, k, tn, itemsize, w_buffers):
    """Row tile: VMEM-limited maximum, with megacore / per-step-traffic preferences."""
    sub = _sublane_align(itemsize)
    k_lanes = _round_up(k, 128)
    n_lanes = _round_up(tn, 128)
    # Resident buffers at their padded VMEM footprint.
    w_vmem = w_buffers * _round_up(k, sub) * n_lanes * itemsize
    b_vmem = w_buffers * sub * n_lanes * itemsize
    budget = _VMEM_WORKING_BUDGET - w_vmem - b_vmem
    # Double-buffered streamed x row-tile + out row-tile, lane-padded.
    per_row_vmem = 2 * (k_lanes + n_lanes) * itemsize
    tm_vmem = max(sub, budget // per_row_vmem)
    if m <= tm_vmem:
        return int(m)  # single full-extent block along M (always legal)
    # Prefer >= 4 row tiles so both v7x TensorCores get work, but never shrink a step
    # below the HBM-traffic target that amortizes per-grid-step overhead.
    per_row_hbm = max(1, (k + tn) * itemsize)
    tm = min(tm_vmem, _round_up(pl.cdiv(m, 4), sub))
    if tm * per_row_hbm < _STEP_TRAFFIC_TARGET:
        rows_for_traffic = _round_up(max(1, _STEP_TRAFFIC_TARGET // per_row_hbm), sub)
        tm = min(tm_vmem, rows_for_traffic)
    tm = min(tm, m)
    # MXU-friendly 512 alignment for big tiles; dtype sublane alignment otherwise.
    if tm >= 1024:
        tm = _round_down(tm, 512)
    else:
        tm = max(sub, _round_down(tm, sub))
    return int(tm)


def channel_adapter(x, weight, bias, *, block_m=None, block_n=None, use_pallas=None):
    """y = x @ weight.T + bias over the last axis of x (PyTorch nn.Linear semantics).

    x:      (..., in_channels)
    weight: (out_channels, in_channels)   -- PyTorch nn.Linear convention
    bias:   (out_channels,)
    use_pallas: None -> heuristic (XLA fallback for tiny / lane-starved problems);
                True/False to force.
    """
    out_channels, in_channels = weight.shape
    assert x.shape[-1] == in_channels

    lead = x.shape[:-1]
    m = math.prod(lead) if lead else 1

    if use_pallas is None:
        # Small M (dispatch + per-step overhead dominates) or out_channels < 128
        # (masked partial-lane stores) -> XLA's fused mem-bound lowering wins.
        use_pallas = (m >= 1024) and (out_channels >= 128)
    if not use_pallas:
        return x @ weight.T + bias

    x2d = x.reshape(m, in_channels)
    w_t = weight.T                      # (K, N): one-time, canonical MXU orientation
    b2d = bias.reshape(1, out_channels)

    itemsize = jnp.dtype(x.dtype).itemsize
    sub = _sublane_align(itemsize)

    tn = block_n if block_n is not None else _choose_block_n(
        in_channels, out_channels, itemsize)
    grid_n = pl.cdiv(out_channels, tn)

    # Single-buffer the resident weight/bias when they are never re-fetched (constant
    # block index across the grid) and large enough to matter (v7x: 64 MiB VMEM/TC).
    w_tile_bytes = _round_up(in_channels, sub) * _round_up(tn, 128) * itemsize
    single_buffer_w = (grid_n == 1) and (w_tile_bytes >= 8 * 1024 * 1024)
    w_buffers = 1 if single_buffer_w else 2

    tm = block_m if block_m is not None else _choose_block_m(
        m, in_channels, tn, itemsize, w_buffers)
    grid_m = pl.cdiv(m, tm)   # ragged tail: pipeline masks the partial edge block

    w_spec_kwargs = dict(pipeline_mode=pl.Buffered(1)) if single_buffer_w else {}
    b_spec_kwargs = dict(pipeline_mode=pl.Buffered(1)) if single_buffer_w else {}

    cost = pl.CostEstimate(
        flops=2 * m * in_channels * out_channels,
        transcendentals=0,
        bytes_accessed=(m * in_channels + in_channels * out_channels
                        + out_channels + m * out_channels) * itemsize,
    )

    y2d = pl.pallas_call(
        _linear_kernel,
        out_shape=jax.ShapeDtypeStruct((m, out_channels), x.dtype),
        grid_spec=pltpu.PrefetchScalarGridSpec(
            num_scalar_prefetch=0,
            # N outer, M inner: weight/bias block index only changes on the slow axis,
            # so the resident weight is not re-fetched across row tiles.
            grid=(grid_n, grid_m),
            in_specs=[
                pl.BlockSpec((tm, in_channels), lambda j, i: (i, 0)),
                pl.BlockSpec((in_channels, tn), lambda j, i: (0, j), **w_spec_kwargs),
                pl.BlockSpec((1, tn), lambda j, i: (0, j), **b_spec_kwargs),
            ],
            out_specs=pl.BlockSpec((tm, tn), lambda j, i: (i, j)),
        ),
        compiler_params=pltpu.CompilerParams(
            # All (i, j) tiles independent -> shard across both TCs on v7x.
            dimension_semantics=("parallel", "parallel"),
            vmem_limit_bytes=_VMEM_LIMIT_BYTES,
        ),
        cost_estimate=cost,
    )(x2d, w_t, b2d)

    return y2d.reshape(*lead, out_channels)


if __name__ == "__main__":
    in_channels, out_channels = 7, 21

    key = jax.random.PRNGKey(0)
    k_x, k_x2, k_x3, k_w, k_b, k_w3, k_b3 = jax.random.split(key, 7)

    # Deterministic parameters (PyTorch nn.Linear shapes: W (out, in), b (out,)).
    bound = 1.0 / (in_channels ** 0.5)
    weight = jax.random.uniform(
        k_w, (out_channels, in_channels), jnp.float32, -bound, bound)
    bias = jax.random.uniform(k_b, (out_channels,), jnp.float32, -bound, bound)

    # 1) Small demo shape (batch=2, seq=16): force the Pallas path (single full block).
    x_small = jax.random.normal(k_x, (2, 16, in_channels), dtype=jnp.float32)
    y_small = jax.block_until_ready(
        channel_adapter(x_small, weight, bias, use_pallas=True))
    ref_small = x_small @ weight.T + bias
    assert y_small.shape == (2, 16, out_channels)
    assert jnp.allclose(y_small, ref_small, atol=1e-5, rtol=1e-5)

    # 2) Ragged multi-tile M (M=516, block_m=128 -> 5 row tiles, masked partial tail,
    #    no host-side padding copy of x).
    x_ragged = jax.random.normal(k_x2, (3, 172, in_channels), dtype=jnp.float32)
    y_ragged = jax.block_until_ready(
        channel_adapter(x_ragged, weight, bias, block_m=128, use_pallas=True))
    ref_ragged = x_ragged @ weight.T + bias
    assert y_ragged.shape == (3, 172, out_channels)
    assert jnp.allclose(y_ragged, ref_ragged, atol=1e-5, rtol=1e-5)

    # 3) Wider adapter exercising the 2-D (N x M) grid with a ragged M edge
    #    (M=900, block_m=256 -> 4 row tiles; N=384, block_n=128 -> 3 column tiles).
    k2_in, k2_out = 256, 384
    w_big = jax.random.normal(k_w3, (k2_out, k2_in), dtype=jnp.float32) * 0.05
    b_big = jax.random.normal(k_b3, (k2_out,), dtype=jnp.float32) * 0.05
    x_big = jax.random.normal(k_x3, (3, 300, k2_in), dtype=jnp.float32)
    y_big = jax.block_until_ready(
        channel_adapter(x_big, w_big, b_big, block_m=256, block_n=128, use_pallas=True))
    ref_big = x_big @ w_big.T + b_big
    assert y_big.shape == (3, 300, k2_out)
    assert jnp.allclose(y_big, ref_big, atol=2e-2, rtol=2e-2)

    # 4) Default heuristic: tiny / lane-starved problems fall back to fused XLA.
    y_fb = jax.block_until_ready(channel_adapter(x_small, weight, bias))
    assert jnp.allclose(y_fb, ref_small, atol=1e-5, rtol=1e-5)

    print("KERNEL_OK")
</pallas_src>

<mosaic_0001>
module attributes {stable_mosaic.version = 11 : i64} {
  func.func @_linear_kernel(%arg0: i32, %arg1: i32, %arg2: memref<32x7xf32, #tpu.memory_space<vmem>>, %arg3: memref<7x21xf32, #tpu.memory_space<vmem>>, %arg4: memref<1x21xf32, #tpu.memory_space<vmem>>, %arg5: memref<32x21xf32, #tpu.memory_space<vmem>>) attributes {dimension_semantics = [#tpu.dimension_semantics<parallel>, #tpu.dimension_semantics<parallel>], iteration_bounds = array<i64: 1, 1>, scalar_prefetch = 0 : i64, scratch_operands = 0 : i64, tpu.core_type = #tpu.core_type<tc>, window_params = [{transform_indices = @transform_0, window_bounds = array<i64: 32, 7>}, {transform_indices = @transform_1, window_bounds = array<i64: 7, 21>}, {transform_indices = @transform_2, window_bounds = array<i64: 1, 21>}, {transform_indices = @transform_3, window_bounds = array<i64: 32, 21>}]} {
    %c0 = arith.constant 0 : index
    %c0_0 = arith.constant 0 : index
    %0 = vector.load %arg2[%c0, %c0_0] : memref<32x7xf32, #tpu.memory_space<vmem>>, vector<32x7xf32>
    %c0_1 = arith.constant 0 : index
    %c0_2 = arith.constant 0 : index
    %1 = vector.load %arg3[%c0_1, %c0_2] : memref<7x21xf32, #tpu.memory_space<vmem>>, vector<7x21xf32>
    %cst = arith.constant dense<0.000000e+00> : vector<32x21xf32>
    %2 = tpu.matmul %0, %1, %cst {dimension_numbers = #tpu.dot_dimension_numbers<[1], [0], [0], [1], [0, 0, 1, 1], [], []>} : vector<32x7xf32>, vector<7x21xf32>, vector<32x21xf32> -> vector<32x21xf32>
    %c0_3 = arith.constant 0 : index
    %c0_4 = arith.constant 0 : index
    %3 = vector.load %arg4[%c0_3, %c0_4] : memref<1x21xf32, #tpu.memory_space<vmem>>, vector<1x21xf32>
    %4 = vector.broadcast %3 : vector<1x21xf32> to vector<32x21xf32>
    %5 = arith.addf %2, %4 : vector<32x21xf32>
    %c0_5 = arith.constant 0 : index
    %c0_6 = arith.constant 0 : index
    %6 = vector.load %arg5[%c0_5, %c0_6] : memref<32x21xf32, #tpu.memory_space<vmem>>, vector<32x21xf32>
    tpu.vector_store %arg5[%c0_5, %c0_6], %5 {strides = array<i32>} : memref<32x21xf32, #tpu.memory_space<vmem>>, vector<32x21xf32>,
    return
  }
  func.func @transform_0(%arg0: i32, %arg1: i32) -> (i32, i32) {
    %c0_i32 = arith.constant 0 : i32
    %c0_i32_0 = arith.constant 0 : i32
    return %arg1, %c0_i32 : i32, i32
  }
  func.func @transform_1(%arg0: i32, %arg1: i32) -> (i32, i32) {
    %c0_i32 = arith.constant 0 : i32
    %c0_i32_0 = arith.constant 0 : i32
    return %c0_i32, %arg0 : i32, i32
  }
  func.func @transform_2(%arg0: i32, %arg1: i32) -> (i32, i32) {
    %c0_i32 = arith.constant 0 : i32
    %c0_i32_0 = arith.constant 0 : i32
    return %c0_i32, %arg0 : i32, i32
  }
  func.func @transform_3(%arg0: i32, %arg1: i32) -> (i32, i32) {
    %c0_i32 = arith.constant 0 : i32
    return %arg1, %arg0 : i32, i32
  }
}

</mosaic_0001>

<llo_original>
// kernel: tpu_custom_call.1
$region0: #{tpu_custom_call.1}
  #allocation0 [shape = 'u32[]', space=smem, size = 0x4, offset = 0x4, fixed_abs, tag = 'smem constant byte address 0x4 - core index']
  #allocation1 [shape = 'u32[144,128]{1,0:T(1,128)}', space=vmem, size = 0x12000, scoped, tag = 'internal scratch']
  %s0 = inlined_call_operand.vmem [shape: f32[32,7], index: 0, kind: input, shape index: {}]
  %s1 = inlined_call_operand.vmem [shape: f32[7,21], index: 1, kind: input, shape index: {}]
  %s2 = inlined_call_operand.vmem [shape: f32[1,21], index: 2, kind: input, shape index: {}]
  %s3 = inlined_call_operand.vmem [shape: f32[32,21], index: 3, kind: output, shape index: {}]
  %s4 = sld [smem:[#allocation0]]
  $region22: #{tpu_custom_call.1} parent=0
    _
  %s6 = ssub.s32 1, %s4
  %s7 = scalar_select 0, %s6, %s4
  // Predicated region
  $region2: #{tpu_custom_call.1} parent=0 // pred_check
    _
  $region3: #{tpu_custom_call.1} parent=0 // pred_check_branch
    %9 = sbr.rel (0) target = $region5
  $region4: #{tpu_custom_call.1} parent=0 // pred_region
    _
  $region5: #{tpu_custom_call.1} parent=0 // pred_fallthru
    _
  // Predicated region
  $region6: #{tpu_custom_call.1} parent=0 // pred_check
    _
  $region7: #{tpu_custom_call.1} parent=0 // pred_check_branch
    %11 = sbr.rel (0) target = $region9
  $region8: #{tpu_custom_call.1} parent=0 // pred_region
    _
  $region9: #{tpu_custom_call.1} parent=0 // pred_fallthru
    _
  // Predicated region
  $region10: #{tpu_custom_call.1} parent=0 // pred_check
    _
  $region11: #{tpu_custom_call.1} parent=0 // pred_check_branch
    %13 = sbr.rel (0) target = $region13
  $region12: #{tpu_custom_call.1} parent=0 // pred_region
    _
  $region13: #{tpu_custom_call.1} parent=0 // pred_fallthru
    _
  %v14 = vld [vmem:[%s0] sm:$0xff]
  %v15 = vld [vmem:[%s0 + $0x8] sm:$0xff]
  %v16 = vld [vmem:[%s0 + $0x10] sm:$0xff]
  %v17 = vld [vmem:[%s0 + $0x18] sm:$0xff]
  %v18 = vld [vmem:[%s1] sm:$0x7f]
  %v19 = vld [vmem:[%s2] sm:$0x1]
  %v21 = vlaneseq
  %v22 = vshrl.u32 %v21, 7
  %v23 = vsub.s32 0, %v22
  %v24 = vrot.slane %v19, %v23
  %vm26 = vcmask 56320
  %v28 = vsel %vm26, %v14, 0
  %v31 = vsel %vm26, %v15, 0
  %v34 = vsel %vm26, %v16, 0
  %v37 = vsel %vm26, %v17, 0
  %vm39 = vcmask 1046528
  %v41 = vsel %vm39, %v18, 0
  %43 = vmatprep.subr.mxu0 0.0
  %44 = vmatpush1.msra.mxu0 %v41
  %45 = vmatprep.subr.mxu0 0.0
  %46 = vmatpush1.msra.mxu0 0.0
  %47 = vmatprep.subr.mxu0 0.0
  %48 = vmatpush1.msra.mxu0 0.0
  %49 = vmatprep.subr.mxu0 0.0
  %50 = vmatpush1.msra.mxu0 0.0
  %51 = vmatprep.subr.mxu0 0.0
  %52 = vmatpush1.msra.mxu0 0.0
  %53 = vmatprep.subr.mxu0 0.0
  %54 = vmatpush1.msra.mxu0 0.0
  %55 = vmatprep.subr.mxu0 0.0
  %56 = vmatpush1.msra.mxu0 0.0
  %57 = vmatprep.subr.mxu0 0.0
  %58 = vmatpush1.msra.mxu0 0.0
  %59 = vmatprep.subr.mxu0 0.0
  %60 = vmatpush1.msra.mxu0 0.0
  %61 = vmatprep.subr.mxu0 0.0
  %62 = vmatpush1.msra.mxu0 0.0
  %63 = vmatprep.subr.mxu0 0.0
  %64 = vmatpush1.msra.mxu0 0.0
  %65 = vmatprep.subr.mxu0 0.0
  %66 = vmatpush1.msra.mxu0 0.0
  %67 = vmatprep.subr.mxu0 0.0
  %68 = vmatpush1.msra.mxu0 0.0
  %69 = vmatprep.subr.mxu0 0.0
  %70 = vmatpush1.msra.mxu0 0.0
  %71 = vmatprep.subr.mxu0 0.0
  %72 = vmatpush1.msra.mxu0 0.0
  %73 = vmatprep.subr.mxu0 0.0
  %74 = vmatpush1.msra.mxu0 0.0
  %75 = vmatprep.subr.mxu0 0.0
  %76 = vmatpush1.msra.mxu0 0.0
  %77 = vmatprep.subr.mxu0 0.0
  %78 = vmatpush1.msra.mxu0 0.0
  %79 = vmatprep.subr.mxu0 0.0
  %80 = vmatpush1.msra.mxu0 0.0
  %81 = vmatprep.subr.mxu0 0.0
  %82 = vmatpush1.msra.mxu0 0.0
  %83 = vmatprep.subr.mxu0 0.0
  %84 = vmatpush1.msra.mxu0 0.0
  %85 = vmatprep.subr.mxu0 0.0
  %86 = vmatpush1.msra.mxu0 0.0
  %87 = vmatprep.subr.mxu0 0.0
  %88 = vmatpush1.msra.mxu0 0.0
  %89 = vmatprep.subr.mxu0 0.0
  %90 = vmatpush1.msra.mxu0 0.0
  %91 = vmatprep.subr.mxu0 0.0
  %92 = vmatpush1.msra.mxu0 0.0
  %93 = vmatprep.subr.mxu0 0.0
  %94 = vmatpush1.msra.mxu0 0.0
  %95 = vmatprep.subr.mxu0 0.0
  %96 = vmatpush1.msra.mxu0 0.0
  %97 = vmatprep.subr.mxu0 0.0
  %98 = vmatpush1.msra.mxu0 0.0
  %99 = vmatprep.subr.mxu0 0.0
  %100 = vmatpush1.msra.mxu0 0.0
  %101 = vmatprep.subr.mxu0 0.0
  %102 = vmatpush1.msra.mxu0 0.0
  %103 = vmatprep.subr.mxu0 0.0
  %104 = vmatpush1.msra.mxu0 0.0
  %105 = vmatprep.subr.mxu0 0.0
  %106 = vmatpush1.msra.mxu0 0.0
  %107 = vmatprep.mubr.f32.mxu0 0.0
  %108 = vmatmul.mubr.f32.gmra.mrb[0].mxu0 %v28
  %v109 = vpop.f32.mrb[0].mxu0
  %v110 = vadd.f32 %v24, %v109
  %v111 = vpop.f32.mrb[0].mxu0
  %112 = vmatprep.mubr.f32.mxu0 0.0
  %113 = vmatmul.mubr.f32.gmra.mrb[0].mxu0 %v31
  %v114 = vpop.f32.mrb[0].mxu0
  %v115 = vadd.f32 %v24, %v114
  %v116 = vpop.f32.mrb[0].mxu0
  %117 = vmatprep.mubr.f32.mxu0 0.0
  %118 = vmatmul.mubr.f32.gmra.mrb[0].mxu0 %v34
  %v119 = vpop.f32.mrb[0].mxu0
  %v120 = vadd.f32 %v24, %v119
  %v121 = vpop.f32.mrb[0].mxu0
  %122 = vmatprep.mubr.f32.mxu0 0.0
  %123 = vmatmul.mubr.f32.gmra.mrb[0].mxu0 %v37
  %v124 = vpop.f32.mrb[0].mxu0
  %v125 = vadd.f32 %v24, %v124
  %v126 = vpop.f32.mrb[0].mxu0
  %127 = vdwg.mxu0
  %vm128 = vcmask 171008
  %129 = vst.msk [vmem:[%s3] sm:$0xff] %vm128, %v110
  %130 = vst.msk [vmem:[%s3 + $0x8] sm:$0xff] %vm128, %v115
  %131 = vst.msk [vmem:[%s3 + $0x10] sm:$0xff] %vm128, %v120
  %132 = vst.msk [vmem:[%s3 + $0x18] sm:$0xff] %vm128, %v125
  // Predicated region
  $region14: #{tpu_custom_call.1} parent=0 // pred_check
    _
  $region15: #{tpu_custom_call.1} parent=0 // pred_check_branch
    %134 = sbr.rel (0) target = $region17
  $region16: #{tpu_custom_call.1} parent=0 // pred_region
    _
  $region17: #{tpu_custom_call.1} parent=0 // pred_fallthru
    _
  // Predicated region
  $region18: #{tpu_custom_call.1} parent=0 // pred_check
    _
  $region19: #{tpu_custom_call.1} parent=0 // pred_check_branch
    %136 = sbr.rel (0) target = $region21
  $region20: #{tpu_custom_call.1} parent=0 // pred_region
    _
  $region21: #{tpu_custom_call.1} parent=0 // pred_fallthru
    _

</llo_original>
